<compile_context>
chip_gen: v7x
topology: tpu7x:2x2x1
jax: 0.10.0
libtpu: 0.0.40
codegen_flags: <defaults>
</compile_context>

<pallas_src>
import numpy as np
import jax
import jax.numpy as jnp
from jax import lax
from jax.experimental import pallas as pl
from jax.experimental.pallas import tpu as pltpu

_CHANNELS = (5, 8, 11, 11)          # channel chain of t_convb, t_convc, t_convd
_K = 4
_STRIDE = 2
_PAD = 1
_C_IN = _CHANNELS[0]                # 5
_C_OUT = _CHANNELS[-1]              # 11
_UP = 8                             # total upsampling factor (2**3)
_Z_LANES = 3 * _C_IN + 1            # 16: [x_prev | x_cur | x_next | 1]
_K_STACK = 3 * _Z_LANES             # 48: [interior | first-row delta | last-row delta]
_N_OUT = _UP * _C_OUT               # 88 real output lanes (j-major, channel-minor)
_N_PAD = 128                        # lane-dense padded output width
_IN_LANES = _C_IN + 2               # x(5) + first/last boundary masks


# ----------------------------------------------------------------------------- kernel --
def _decode_kernel(x_ref, w_ref, o_ref):
    r = x_ref.shape[0]                                   # tile rows (static)
    c = _C_IN
    x = x_ref[:, :c]                                     # (R, 5)
    first = x_ref[:, c:c + 1]                            # 1.0 on first row of a batch elem
    last = x_ref[:, c + 1:c + 2]                         # 1.0 on last row of a batch elem
    # +/-1-row neighbors via sublane rotation (XLU).  The rotation wraps at the tile edge
    # and crosses batch elements at interior boundaries -- exactly the rows where
    # first/last == 1, so the masks repair both cases.
    x_prev = pltpu.roll(x, 1 % r, 0) * (1.0 - first)
    x_next = pltpu.roll(x, (r - 1) % r, 0) * (1.0 - last)
    ones = jnp.ones((r, 1), jnp.float32)
    z = jnp.concatenate([x_prev, x, x_next, ones], axis=1)          # (R, 16)
    zs = jnp.concatenate([z, first * z, last * z], axis=1)          # (R, 48)
    # Single MXU matmul = fused 3-layer transposed conv, bias folded via the ones lane.
    o_ref[...] = jnp.dot(zs, w_ref[...], preferred_element_type=jnp.float32)


def _batches_per_tile(b, l0):
    """Largest bpb dividing B with bpb*l0 a multiple of 8 and roughly <= 1024 rows."""
    target = 1024
    upper = min(b, max(1, target // max(l0, 1)))
    for bpb in range(upper, 0, -1):
        if b % bpb == 0 and (bpb * l0) % 8 == 0:
            return bpb
    return b                       # fall back to a single block (block rows == full dim)


@jax.jit
def decode_tcn_forward(x_ncl, packed_w):
    """x_ncl: (B, 5, L) float32.  Returns (B, 11, 8*L), matching torch DecodeTCN."""
    b, cin, l0 = x_ncl.shape
    assert cin == _C_IN
    bl = b * l0
    bpb = _batches_per_tile(b, l0)
    tile_rows = bpb * l0
    grid = (bl // tile_rows,)

    # Rows are (batch, position).  Boundary masks are built once here (vectorized XLA)
    # and ride along as two extra input lanes.
    x_rows = jnp.transpose(x_ncl, (0, 2, 1)).reshape(bl, cin).astype(jnp.float32)
    pos = jnp.arange(l0, dtype=jnp.int32)
    first = jnp.tile((pos == 0).astype(jnp.float32), b).reshape(bl, 1)
    last = jnp.tile((pos == l0 - 1).astype(jnp.float32), b).reshape(bl, 1)
    x_aug = jnp.concatenate([x_rows, first, last], axis=1)          # (BL, 7)

    out_rows = pl.pallas_call(
        _decode_kernel,
        out_shape=jax.ShapeDtypeStruct((bl, _N_PAD), jnp.float32),
        grid=grid,
        in_specs=[
            pl.BlockSpec((tile_rows, _IN_LANES), lambda i: (i, 0)),
            pl.BlockSpec((_K_STACK, _N_PAD), lambda i: (0, 0)),     # resident, DMA'd once
        ],
        out_specs=pl.BlockSpec((tile_rows, _N_PAD), lambda i: (i, 0)),
        compiler_params=pltpu.CompilerParams(dimension_semantics=("parallel",)),
    )(x_aug, packed_w)

    out = out_rows[:, :_N_OUT].reshape(b, _UP * l0, _C_OUT)         # (B, 8L, 11) NLC
    # TODO(synk): skip this transpose for NLC consumers (extra full HBM pass in XLA).
    return jnp.transpose(out, (0, 2, 1))


# -------------------------------------------------------------------- parameter packing --
def pack_params(params):
    """Collapse the 3 ConvTranspose1d layers into one affine map per row class.

    Output position 8*m+j depends only on x[m-1..m+1]; we impulse-probe the reference to
    extract the exact 16x88 affine map acting on [x[m-1], x[m], x[m+1], 1] for three row
    classes and pack
        rows  0..15 : W_interior
        rows 16..31 : W_first_row - W_interior   (gated by the m==0   mask)
        rows 32..47 : W_last_row  - W_interior   (gated by the m==L-1 mask)
    zero-padded to (48, 128) so the kernel's output store is lane dense.
    """
    lp = 5                        # probe length: row 2 is a true interior row
    cin = _C_IN
    probes = np.zeros((1 + cin * lp, cin, lp), np.float32)
    for p in range(lp):
        for c in range(cin):
            probes[1 + p * cin + c, c, p] = 1.0
    y = np.asarray(decode_tcn_ref(jnp.asarray(probes), params))     # (26, 11, 8*lp)

    def window(bi, m):            # (88,) response of row m, j-major / channel-minor
        return np.transpose(y[bi, :, 8 * m: 8 * m + 8], (1, 0)).reshape(_N_OUT)

    def affine(m, dep_pos):       # dep_pos: probe positions for (prev, cur, next)
        w = np.zeros((_Z_LANES, _N_OUT), np.float32)
        bias = window(0, m)
        w[3 * cin] = bias                                            # ones lane -> bias
        for d, p in enumerate(dep_pos):
            if p is None:
                continue
            for c in range(cin):
                w[d * cin + c] = window(1 + p * cin + c, m) - bias
        return w

    w_int = affine(2, (1, 2, 3))
    w_first = affine(0, (None, 0, 1))
    w_last = affine(lp - 1, (lp - 2, lp - 1, None))

    buf = np.zeros((_K_STACK, _N_PAD), np.float32)
    buf[0 * _Z_LANES:1 * _Z_LANES, :_N_OUT] = w_int
    buf[1 * _Z_LANES:2 * _Z_LANES, :_N_OUT] = w_first - w_int
    buf[2 * _Z_LANES:3 * _Z_LANES, :_N_OUT] = w_last - w_int
    return jnp.asarray(buf)


def init_params(key):
    params = []
    for layer in range(3):
        cin, cout = _CHANNELS[layer], _CHANNELS[layer + 1]
        key, kw, kb = jax.random.split(key, 3)
        bound = 1.0 / float(np.sqrt(cin * _K))        # torch-like uniform scale
        w = jax.random.uniform(kw, (cin, cout, _K), jnp.float32, -bound, bound)
        b = jax.random.uniform(kb, (cout,), jnp.float32, -bound, bound)
        params.append((w, b))
    return params


# --------------------------------------------------------------------------- reference --
def _conv_transpose1d_ref(x, w, bias):
    """Direct scatter-form ConvTranspose1d (NCL), stride=2, k=4, padding=1."""
    b, cin, l = x.shape
    _, cout, k = w.shape
    l_full = (l - 1) * _STRIDE + k
    y = jnp.zeros((b, cout, l_full), jnp.float32)
    for pos in range(l):
        contrib = jnp.einsum('bi,iok->bok', x[:, :, pos], w,
                             precision=lax.Precision.HIGHEST)
        y = y.at[:, :, pos * _STRIDE: pos * _STRIDE + k].add(contrib)
    y = y[:, :, _PAD:l_full - _PAD]
    return y + bias[None, :, None]


def decode_tcn_ref(x_ncl, params):
    x = x_ncl.astype(jnp.float32)
    for w, bias in params:
        x = _conv_transpose1d_ref(x, w, bias)
    return x


# --------------------------------------------------------------------------------- main --
if __name__ == "__main__":
    key = jax.random.PRNGKey(0)
    key, kx = jax.random.split(key)
    B, C, L = 2, 5, 8                        # DecodeTCN input implies Cin=5
    x = jax.random.normal(kx, (B, C, L), jnp.float32)
    params = init_params(key)
    packed = pack_params(params)

    out = decode_tcn_forward(x, packed)
    out = jax.block_until_ready(out)

    ref = decode_tcn_ref(x, params)
    assert out.shape == ref.shape == (B, 11, L * _UP), out.shape
    np.testing.assert_allclose(np.asarray(out), np.asarray(ref), rtol=5e-3, atol=5e-3)
    print("KERNEL_OK")
</pallas_src>

<mosaic_0001>
module attributes {stable_mosaic.version = 11 : i64} {
  func.func @_decode_kernel(%arg0: i32, %arg1: memref<16x7xf32, #tpu.memory_space<vmem>>, %arg2: memref<48x128xf32, #tpu.memory_space<vmem>>, %arg3: memref<16x128xf32, #tpu.memory_space<vmem>>) attributes {dimension_semantics = [#tpu.dimension_semantics<parallel>], iteration_bounds = array<i64: 1>, scalar_prefetch = 0 : i64, scratch_operands = 0 : i64, tpu.core_type = #tpu.core_type<tc>, window_params = [{transform_indices = @transform_0, window_bounds = array<i64: 16, 7>}, {pipeline_mode = #tpu.pipeline_mode<synchronous>, transform_indices = @transform_1, window_bounds = array<i64: 48, 128>}, {transform_indices = @transform_2, window_bounds = array<i64: 16, 128>}]} {
    %c0 = arith.constant 0 : index
    %c0_0 = arith.constant 0 : index
    %0 = vector.load %arg1[%c0, %c0_0] : memref<16x7xf32, #tpu.memory_space<vmem>>, vector<16x5xf32>
    %c0_1 = arith.constant 0 : index
    %c5 = arith.constant 5 : index
    %1 = vector.load %arg1[%c0_1, %c5] : memref<16x7xf32, #tpu.memory_space<vmem>>, vector<16x1xf32>
    %c0_2 = arith.constant 0 : index
    %c6 = arith.constant 6 : index
    %2 = vector.load %arg1[%c0_2, %c6] : memref<16x7xf32, #tpu.memory_space<vmem>>, vector<16x1xf32>
    %c1_i32 = arith.constant 1 : i32
    %3 = tpu.dynamic_rotate %0 by %c1_i32 dim 0 : vector<16x5xf32>, i32 -> vector<16x5xf32>
    %cst = arith.constant 1.000000e+00 : f32
    %4 = vector.broadcast %cst : f32 to vector<16x1xf32>
    %5 = arith.subf %4, %1 : vector<16x1xf32>
    %6 = vector.broadcast %5 : vector<16x1xf32> to vector<16x5xf32>
    %7 = arith.mulf %3, %6 : vector<16x5xf32>
    %c15_i32 = arith.constant 15 : i32
    %8 = tpu.dynamic_rotate %0 by %c15_i32 dim 0 : vector<16x5xf32>, i32 -> vector<16x5xf32>
    %cst_3 = arith.constant 1.000000e+00 : f32
    %9 = vector.broadcast %cst_3 : f32 to vector<16x1xf32>
    %10 = arith.subf %9, %2 : vector<16x1xf32>
    %11 = vector.broadcast %10 : vector<16x1xf32> to vector<16x5xf32>
    %12 = arith.mulf %8, %11 : vector<16x5xf32>
    %cst_4 = arith.constant 1.000000e+00 : f32
    %13 = vector.broadcast %cst_4 : f32 to vector<16x1xf32>
    %14 = tpu.concatenate %7, %0, %12, %13 in 1 : vector<16x5xf32>, vector<16x5xf32>, vector<16x5xf32>, vector<16x1xf32> -> vector<16x16xf32>
    %15 = vector.broadcast %1 : vector<16x1xf32> to vector<16x16xf32>
    %16 = arith.mulf %15, %14 : vector<16x16xf32>
    %17 = vector.broadcast %2 : vector<16x1xf32> to vector<16x16xf32>
    %18 = arith.mulf %17, %14 : vector<16x16xf32>
    %19 = tpu.concatenate %14, %16, %18 in 1 : vector<16x16xf32>, vector<16x16xf32>, vector<16x16xf32> -> vector<16x48xf32>
    %c0_5 = arith.constant 0 : index
    %c0_6 = arith.constant 0 : index
    %20 = vector.load %arg2[%c0_5, %c0_6] : memref<48x128xf32, #tpu.memory_space<vmem>>, vector<48x128xf32>
    %cst_7 = arith.constant dense<0.000000e+00> : vector<16x128xf32>
    %21 = tpu.matmul %19, %20, %cst_7 {dimension_numbers = #tpu.dot_dimension_numbers<[1], [0], [0], [1], [0, 0, 1, 1], [], []>} : vector<16x48xf32>, vector<48x128xf32>, vector<16x128xf32> -> vector<16x128xf32>
    %c0_8 = arith.constant 0 : index
    %c0_9 = arith.constant 0 : index
    %22 = vector.load %arg3[%c0_8, %c0_9] : memref<16x128xf32, #tpu.memory_space<vmem>>, vector<16x128xf32>
    tpu.vector_store %arg3[%c0_8, %c0_9], %21 {strides = array<i32>} : memref<16x128xf32, #tpu.memory_space<vmem>>, vector<16x128xf32>,
    return
  }
  func.func @transform_0(%arg0: i32) -> (i32, i32) {
    %c0_i32 = arith.constant 0 : i32
    %c0_i32_0 = arith.constant 0 : i32
    return %arg0, %c0_i32 : i32, i32
  }
  func.func @transform_1(%arg0: i32) -> (i32, i32) {
    %c0_i32 = arith.constant 0 : i32
    %c0_i32_0 = arith.constant 0 : i32
    %c0_i32_1 = arith.constant 0 : i32
    return %c0_i32, %c0_i32_0 : i32, i32
  }
  func.func @transform_2(%arg0: i32) -> (i32, i32) {
    %c0_i32 = arith.constant 0 : i32
    %c0_i32_0 = arith.constant 0 : i32
    return %arg0, %c0_i32 : i32, i32
  }
}

</mosaic_0001>

<llo_original>
// kernel: tile.13
$region0: #{tile.13}
  #allocation0 [shape = 's32[1]{0}', space=sflag, size = 0x4, scoped, tag = 'scoped memory for tile.13']
  %s0 = inlined_call_operand.vmem [shape: f32[8], index: 0, kind: input, shape index: {}]
  %s1 = inlined_call_operand.vmem [shape: f32[2,8], index: 1, kind: output, shape index: {}]
  // Predicated region
  $region2: #{tile.13} parent=0 // pred_check
    _
  $region3: #{tile.13} parent=0 // pred_check_branch
    %3 = sbr.rel (0) target = $region5
  $region4: #{tile.13} parent=0 // pred_region
    _
  $region5: #{tile.13} parent=0 // pred_fallthru
    _
  %v4 = vld [vmem:[%s0] ss:$0 sm:$0xff]
  %5 = vst [vmem:[%s1] sm:$0x3] %v4

// kernel: tile.1
$region0: #{tile.1}
  %s0 = inlined_call_operand.vmem [shape: f32[2,8], index: 0, kind: input, shape index: {}]
  %s1 = inlined_call_operand.vmem [shape: f32[16,1], index: 1, kind: output, shape index: {}]
  $region1: #{tile.1} parent=0
    #allocation0 [shape = 'u8[4096]{0}', space=vmem, size = 0x1000, scoped, tag = 'scoped mem for input reshape']
    %s3 = sshllo.u32 0, 2
    %v4 = vld [vmem:[%s0] sm:%s3]
    %5 = vst [vmem:[#allocation0] sm:%s3] %v4
    %v6 = vld [vmem:[#allocation0] sm:$0x3]
    %vm7 = vcmask 7168
    %8 = vst.msk [vmem:[%s1] ss:$8 sm:$0x3] %vm7, %v6
    %v9 = vld [vmem:[#allocation0] sm:$0x3]
    %10 = vrot.lane.b32.xlu0 %v9, 127
    %v11 = vpop.permute.xlu0 %10
    %vm12 = vcmask 7168
    %s13 = scalar_lea.vmem %s1, 1
    %14 = vst.msk [vmem:[%s13] ss:$8 sm:$0x3] %vm12, %v11
    %v15 = vld [vmem:[#allocation0] sm:$0x3]
    %16 = vrot.lane.b32.xlu0 %v15, 126
    %v17 = vpop.permute.xlu0 %16
    %vm18 = vcmask 7168
    %s19 = scalar_lea.vmem %s1, 2
    %20 = vst.msk [vmem:[%s19] ss:$8 sm:$0x3] %vm18, %v17
    %v21 = vld [vmem:[#allocation0] sm:$0x3]
    %22 = vrot.lane.b32.xlu0 %v21, 125
    %v23 = vpop.permute.xlu0 %22
    %vm24 = vcmask 7168
    %s25 = scalar_lea.vmem %s1, 3
    %26 = vst.msk [vmem:[%s25] ss:$8 sm:$0x3] %vm24, %v23
    %v27 = vld [vmem:[#allocation0] sm:$0x3]
    %28 = vrot.lane.b32.xlu0 %v27, 124
    %v29 = vpop.permute.xlu0 %28
    %vm30 = vcmask 7168
    %s31 = scalar_lea.vmem %s1, 4
    %32 = vst.msk [vmem:[%s31] ss:$8 sm:$0x3] %vm30, %v29
    %v33 = vld [vmem:[#allocation0] sm:$0x3]
    %34 = vrot.lane.b32.xlu0 %v33, 123
    %v35 = vpop.permute.xlu0 %34
    %vm36 = vcmask 7168
    %s37 = scalar_lea.vmem %s1, 5
    %38 = vst.msk [vmem:[%s37] ss:$8 sm:$0x3] %vm36, %v35
    %v39 = vld [vmem:[#allocation0] sm:$0x3]
    %40 = vrot.lane.b32.xlu0 %v39, 122
    %v41 = vpop.permute.xlu0 %40
    %vm42 = vcmask 7168
    %s43 = scalar_lea.vmem %s1, 6
    %44 = vst.msk [vmem:[%s43] ss:$8 sm:$0x3] %vm42, %v41
    %v45 = vld [vmem:[#allocation0] sm:$0x3]
    %46 = vrot.lane.b32.xlu0 %v45, 121
    %v47 = vpop.permute.xlu0 %46
    %vm48 = vcmask 7168
    %s49 = scalar_lea.vmem %s1, 7
    %50 = vst.msk [vmem:[%s49] ss:$8 sm:$0x3] %vm48, %v47

// kernel: decode_tcn_forward.1
$region0: #{decode_tcn_forward.1}
  #allocation0 [shape = 'u32[]', space=smem, size = 0x4, offset = 0x4, fixed_abs, tag = 'smem constant byte address 0x4 - core index']
  #allocation1 [shape = 'u32[144,128]{1,0:T(1,128)}', space=vmem, size = 0x12000, scoped, tag = 'internal scratch']
  %s0 = inlined_call_operand.vmem [shape: f32[16,7], index: 0, kind: input, shape index: {}]
  %s1 = inlined_call_operand.vmem [shape: f32[48,128], index: 1, kind: input, shape index: {}]
  %s2 = inlined_call_operand.vmem [shape: f32[16,128], index: 2, kind: output, shape index: {}]
  %s3 = sld [smem:[#allocation0]]
  $region18: #{decode_tcn_forward.1} parent=0
    _
  %s5 = ssub.s32 1, %s3
  %s6 = scalar_select 0, %s5, %s3
  // Predicated region
  $region2: #{decode_tcn_forward.1} parent=0 // pred_check
    _
  $region3: #{decode_tcn_forward.1} parent=0 // pred_check_branch
    %8 = sbr.rel (0) target = $region5
  $region4: #{decode_tcn_forward.1} parent=0 // pred_region
    _
  $region5: #{decode_tcn_forward.1} parent=0 // pred_fallthru
    _
  // Predicated region
  $region6: #{decode_tcn_forward.1} parent=0 // pred_check
    _
  $region7: #{decode_tcn_forward.1} parent=0 // pred_check_branch
    %10 = sbr.rel (0) target = $region9
  $region8: #{decode_tcn_forward.1} parent=0 // pred_region
    _
  $region9: #{decode_tcn_forward.1} parent=0 // pred_fallthru
    _
  %v11 = vld [vmem:[%s0] sm:$0xff]
  %v12 = vld [vmem:[%s0 + $0x8] sm:$0xff]
  %v13 = vrot.slane %v11, 7
  %v14 = vrot.slane %v12, 7
  %v15 = vlaneseq
  %v16 = vshrl.u32 %v15, 7
  %vm17 = vcmp.lt.s32.totalorder %v16, 1
  %v18 = vsel %vm17, %v13, %v14
  %v19 = vsel %vm17, %v14, %v13
  %v20 = vsub.f32 1.0, %v11
  %v21 = vsub.f32 1.0, %v12
  %23 = vset.pattern.permute.xlu0 5
  %24 = vperm.xlu0 %23, %v20
  %v25 = vpop.permute.xlu0 %24
  %28 = vset.pattern.permute.xlu0 5
  %29 = vperm.xlu0 %28, %v21
  %v30 = vpop.permute.xlu0 %29
  %v32 = vmul.f32 %v19, %v25
  %v33 = vmul.f32 %v18, %v30
  %v34 = vrot.slane %v11, 1
  %v35 = vrot.slane %v12, 1
  %vm36 = vcmp.lt.s32.totalorder %v16, 7
  %v37 = vsel %vm36, %v34, %v35
  %v38 = vsel %vm36, %v35, %v34
  %39 = vset.pattern.permute.xlu0 6
  %40 = vperm.xlu0 %39, %v20
  %v41 = vpop.permute.xlu0 %40
  %43 = vset.pattern.permute.xlu0 6
  %44 = vperm.xlu0 %43, %v21
  %v45 = vpop.permute.xlu0 %44
  %v47 = vmul.f32 %v37, %v41
  %v48 = vmul.f32 %v38, %v45
  %51 = vrot.lane.b32.xlu0 %v11, 5
  %v52 = vpop.permute.xlu0 %51
  %53 = vrot.lane.b32.xlu0 %v12, 5
  %v54 = vpop.permute.xlu0 %53
  %59 = vrot.lane.b32.xlu0 %v47, 10
  %v60 = vpop.permute.xlu0 %59
  %61 = vrot.lane.b32.xlu0 %v48, 10
  %v62 = vpop.permute.xlu0 %61
  %vm65 = vcmask 39936
  %v66 = vsel %vm65, %v32, %v52
  %v67 = vsel %vm65, %v33, %v54
  %vm68 = vcmask 80896
  %v69 = vsel %vm68, %v66, %v60
  %v70 = vsel %vm68, %v67, %v62
  %vm71 = vcmask 121856
  %v72 = vsel %vm71, %v69, 1.0
  %v73 = vsel %vm71, %v70, 1.0
  %74 = vset.pattern.permute.xlu0 5
  %75 = vperm.xlu0 %74, %v11
  %v76 = vpop.permute.xlu0 %75
  %78 = vset.pattern.permute.xlu0 5
  %79 = vperm.xlu0 %78, %v12
  %v80 = vpop.permute.xlu0 %79
  %v82 = vmul.f32 %v76, %v72
  %v83 = vmul.f32 %v80, %v73
  %84 = vset.pattern.permute.xlu0 6
  %85 = vperm.xlu0 %84, %v11
  %v86 = vpop.permute.xlu0 %85
  %88 = vset.pattern.permute.xlu0 6
  %89 = vperm.xlu0 %88, %v12
  %v90 = vpop.permute.xlu0 %89
  %v92 = vmul.f32 %v86, %v72
  %v93 = vmul.f32 %v90, %v73
  %96 = vrot.lane.b32.xlu0 %v82, 16
  %v97 = vpop.permute.xlu0 %96
  %98 = vrot.lane.b32.xlu0 %v83, 16
  %v99 = vpop.permute.xlu0 %98
  %104 = vrot.lane.b32.xlu0 %v92, 32
  %v105 = vpop.permute.xlu0 %104
  %106 = vrot.lane.b32.xlu0 %v93, 32
  %v107 = vpop.permute.xlu0 %106
  %vm110 = vcmask 130048
  %v111 = vsel %vm110, %v72, %v97
  %v112 = vsel %vm110, %v73, %v99
  %vm113 = vcmask 261120
  %v114 = vsel %vm113, %v111, %v105
  %v115 = vsel %vm113, %v112, %v107
  %v116 = vld [vmem:[%s1] sm:$0xff]
  %v117 = vld [vmem:[%s1 + $0x8] sm:$0xff]
  %v118 = vld [vmem:[%s1 + $0x10] sm:$0xff]
  %v119 = vld [vmem:[%s1 + $0x18] sm:$0xff]
  %v120 = vld [vmem:[%s1 + $0x20] sm:$0xff]
  %v121 = vld [vmem:[%s1 + $0x28] sm:$0xff]
  %vm122 = vcmask 392192
  %v124 = vsel %vm122, %v114, 0
  %v127 = vsel %vm122, %v115, 0
  %129 = vmatprep.subr.mxu0 0.0
  %130 = vmatpush1.msra.mxu0 %v116
  %131 = vmatprep.subr.mxu0 0.0
  %132 = vmatpush1.msra.mxu0 %v117
  %133 = vmatprep.subr.mxu0 0.0
  %134 = vmatpush1.msra.mxu0 %v118
  %135 = vmatprep.subr.mxu0 0.0
  %136 = vmatpush1.msra.mxu0 %v119
  %137 = vmatprep.subr.mxu0 0.0
  %138 = vmatpush1.msra.mxu0 %v120
  %139 = vmatprep.subr.mxu0 0.0
  %140 = vmatpush1.msra.mxu0 %v121
  %141 = vmatprep.subr.mxu0 0.0
  %142 = vmatpush1.msra.mxu0 0.0
  %143 = vmatprep.subr.mxu0 0.0
  %144 = vmatpush1.msra.mxu0 0.0
  %145 = vmatprep.subr.mxu0 0.0
  %146 = vmatpush1.msra.mxu0 0.0
  %147 = vmatprep.subr.mxu0 0.0
  %148 = vmatpush1.msra.mxu0 0.0
  %149 = vmatprep.subr.mxu0 0.0
  %150 = vmatpush1.msra.mxu0 0.0
  %151 = vmatprep.subr.mxu0 0.0
  %152 = vmatpush1.msra.mxu0 0.0
  %153 = vmatprep.subr.mxu0 0.0
  %154 = vmatpush1.msra.mxu0 0.0
  %155 = vmatprep.subr.mxu0 0.0
  %156 = vmatpush1.msra.mxu0 0.0
  %157 = vmatprep.subr.mxu0 0.0
  %158 = vmatpush1.msra.mxu0 0.0
  %159 = vmatprep.subr.mxu0 0.0
  %160 = vmatpush1.msra.mxu0 0.0
  %161 = vmatprep.subr.mxu0 0.0
  %162 = vmatpush1.msra.mxu0 0.0
  %163 = vmatprep.subr.mxu0 0.0
  %164 = vmatpush1.msra.mxu0 0.0
  %165 = vmatprep.subr.mxu0 0.0
  %166 = vmatpush1.msra.mxu0 0.0
  %167 = vmatprep.subr.mxu0 0.0
  %168 = vmatpush1.msra.mxu0 0.0
  %169 = vmatprep.subr.mxu0 0.0
  %170 = vmatpush1.msra.mxu0 0.0
  %171 = vmatprep.subr.mxu0 0.0
  %172 = vmatpush1.msra.mxu0 0.0
  %173 = vmatprep.subr.mxu0 0.0
  %174 = vmatpush1.msra.mxu0 0.0
  %175 = vmatprep.subr.mxu0 0.0
  %176 = vmatpush1.msra.mxu0 0.0
  %177 = vmatprep.subr.mxu0 0.0
  %178 = vmatpush1.msra.mxu0 0.0
  %179 = vmatprep.subr.mxu0 0.0
  %180 = vmatpush1.msra.mxu0 0.0
  %181 = vmatprep.subr.mxu0 0.0
  %182 = vmatpush1.msra.mxu0 0.0
  %183 = vmatprep.subr.mxu0 0.0
  %184 = vmatpush1.msra.mxu0 0.0
  %185 = vmatprep.subr.mxu0 0.0
  %186 = vmatpush1.msra.mxu0 0.0
  %187 = vmatprep.subr.mxu0 0.0
  %188 = vmatpush1.msra.mxu0 0.0
  %189 = vmatprep.subr.mxu0 0.0
  %190 = vmatpush1.msra.mxu0 0.0
  %191 = vmatprep.subr.mxu0 0.0
  %192 = vmatpush1.msra.mxu0 0.0
  %193 = vmatprep.mubr.f32.mxu0 0.0
  %194 = vmatmul.mubr.f32.gmra.mrb[0].mxu0 %v124
  %v195 = vpop.f32.mrb[0].mxu0
  %v196 = vadd.f32 0.0, %v195
  %v197 = vpop.f32.mrb[0].mxu0
  %198 = vmatprep.mubr.f32.mxu0 0.0
  %199 = vmatmul.mubr.f32.gmra.mrb[0].mxu0 %v127
  %v200 = vpop.f32.mrb[0].mxu0
  %v201 = vadd.f32 0.0, %v200
  %v202 = vpop.f32.mrb[0].mxu0
  %203 = vdwg.mxu0
  %204 = vst [vmem:[%s2] sm:$0xff] %v196
  %205 = vst [vmem:[%s2 + $0x8] sm:$0xff] %v201
  // Predicated region
  $region10: #{decode_tcn_forward.1} parent=0 // pred_check
    _
  $region11: #{decode_tcn_forward.1} parent=0 // pred_check_branch
    %207 = sbr.rel (0) target = $region13
  $region12: #{decode_tcn_forward.1} parent=0 // pred_region
    _
  $region13: #{decode_tcn_forward.1} parent=0 // pred_fallthru
    _
  // Predicated region
  $region14: #{decode_tcn_forward.1} parent=0 // pred_check
    _
  $region15: #{decode_tcn_forward.1} parent=0 // pred_check_branch
    %209 = sbr.rel (0) target = $region17
  $region16: #{decode_tcn_forward.1} parent=0 // pred_region
    _
  $region17: #{decode_tcn_forward.1} parent=0 // pred_fallthru
    _

</llo_original>
